<compile_context>
chip_gen: v5e
topology: v5e:2x2
jax: 0.10.0
libtpu: 0.0.40
codegen_flags: <defaults>
</compile_context>

<pallas_src>
import numpy as np

import jax
import jax.numpy as jnp
from jax import lax
from jax.experimental import pallas as pl
from jax.experimental.pallas import tpu as pltpu

LANE = 128
SUBLANE = 8


def _round_up(n, m):
    return ((n + m - 1) // m) * m


# ----------------------------------------------------------------------------
# Parameter packing (done once, outside the kernels).
# ----------------------------------------------------------------------------
def pack_params(params, compute_dtype=jnp.bfloat16):
    """Pack LSTM-cell parameters for the Pallas kernels.

    * folds b_xh + b_hh into a single bias
    * lays each of the 4 gate column-slabs out on a 128-lane boundary
      (Hp = round_up(H, 128)) so gate slices / outputs are lane-dense
    * pre-scales the i/f/o slabs (weights + bias) by 0.5 so that
      sigmoid(z) == 0.5*tanh(z_prescaled) + 0.5 without an in-kernel multiply
    * casts weights to `compute_dtype` (bf16 default: MXU-native everywhere,
      halves resident VMEM + serial per-step DMA); bias stays f32 (added to
      the f32 accumulator).

    NOTE (invariant): the zero padding of weight columns, bias and the initial
    c is what keeps the padded lanes H..Hp of the carried state exactly zero
    (the f_t = 0.5 feedback only decays a zero).  Do not remove it.
    """
    w_xh, w_hh = params["w_xh"], params["w_hh"]
    bias = params["b_xh"] + params["b_hh"]                 # bias folding
    H = w_hh.shape[0]
    Hp = max(_round_up(H, LANE), LANE)
    # i, f, o gates pre-scaled by 0.5 (sigmoid via tanh); g (cell) gate unscaled.
    gate_scale = jnp.array([0.5, 0.5, 1.0, 0.5], jnp.float32)

    def pack_cols(w):
        w4 = w.reshape(*w.shape[:-1], 4, H).astype(jnp.float32)
        w4 = w4 * gate_scale[:, None]
        w4 = jnp.pad(w4, [(0, 0)] * (w4.ndim - 1) + [(0, Hp - H)])
        return w4.reshape(*w.shape[:-1], 4 * Hp)

    w_xh_p = pack_cols(w_xh).astype(compute_dtype)                         # [D_in, 4*Hp]
    w_hh_p = pack_cols(w_hh)                                               # [H, 4*Hp]
    w_hh_p = jnp.pad(w_hh_p, ((0, Hp - H), (0, 0))).astype(compute_dtype)  # [Hp, 4*Hp]
    b_p = pack_cols(bias).reshape(1, 4 * Hp)                               # [1, 4*Hp] f32
    return dict(w_xh_p=w_xh_p, w_hh_p=w_hh_p, b_p=b_p,
                hidden_size=H, hidden_pad=Hp, compute_dtype=compute_dtype)


# ----------------------------------------------------------------------------
# Shared gate -> state math (gates are pre-scaled: sigmoid == 0.5*tanh + 0.5).
# ----------------------------------------------------------------------------
def _gates_to_state(gates, c_prev, Hp):
    i_t = 0.5 * jnp.tanh(gates[:, 0 * Hp:1 * Hp]) + 0.5
    f_t = 0.5 * jnp.tanh(gates[:, 1 * Hp:2 * Hp]) + 0.5
    g_t = jnp.tanh(gates[:, 2 * Hp:3 * Hp])
    o_t = 0.5 * jnp.tanh(gates[:, 3 * Hp:4 * Hp]) + 0.5
    c_new = c_prev * f_t + i_t * g_t          # cell-state math stays f32
    h_new = o_t * jnp.tanh(c_new)
    return h_new, c_new


# ----------------------------------------------------------------------------
# Padded-state helpers (pad/unpad only at sequence boundaries).
# ----------------------------------------------------------------------------
def pad_state(packed, h=None, c=None, batch=None, dtype=jnp.float32):
    H, Hp = packed["hidden_size"], packed["hidden_pad"]
    if h is None:  # init_h_or_c: zeros (B, H) -> built directly at padded width
        assert batch is not None
        return jnp.zeros((batch, Hp), dtype), jnp.zeros((batch, Hp), dtype)
    B = h.shape[0]
    h_p = jnp.zeros((B, Hp), dtype).at[:, :H].set(h.astype(dtype))
    c_p = jnp.zeros((B, Hp), dtype).at[:, :H].set(c.astype(dtype))
    return h_p, c_p


def unpad_state(packed, h_p, c_p):
    H = packed["hidden_size"]
    return h_p[:, :H], c_p[:, :H]


# ----------------------------------------------------------------------------
# Single-step cell kernel (exact semantics of GenericLSTMCell.forward).
# ----------------------------------------------------------------------------
def _lstm_cell_kernel(x_ref, h_ref, c_ref, wxh_ref, whh_ref, b_ref, hy_ref, cy_ref):
    Hp = hy_ref.shape[-1]
    cdt = whh_ref.dtype
    gates = (b_ref[...].astype(jnp.float32)
             + jnp.dot(x_ref[...].astype(cdt), wxh_ref[...],
                       preferred_element_type=jnp.float32)
             + jnp.dot(h_ref[...].astype(cdt), whh_ref[...],
                       preferred_element_type=jnp.float32))
    h_new, c_new = _gates_to_state(gates, c_ref[...].astype(jnp.float32), Hp)
    hy_ref[...] = h_new.astype(hy_ref.dtype)
    cy_ref[...] = c_new.astype(cy_ref.dtype)


def generic_lstm_cell_padded(x, packed, h_p, c_p):
    """One step on padded f32 state (B, Hp) -> padded (hy_p, cy_p), aliased in-place."""
    B, Hp = h_p.shape
    full = lambda a: pl.BlockSpec(a.shape, lambda: (0,) * a.ndim)
    hy_p, cy_p = pl.pallas_call(
        _lstm_cell_kernel,
        out_shape=(jax.ShapeDtypeStruct((B, Hp), h_p.dtype),
                   jax.ShapeDtypeStruct((B, Hp), c_p.dtype)),
        in_specs=[full(x), full(h_p), full(c_p),
                  full(packed["w_xh_p"]), full(packed["w_hh_p"]), full(packed["b_p"])],
        out_specs=(pl.BlockSpec((B, Hp), lambda: (0, 0)),
                   pl.BlockSpec((B, Hp), lambda: (0, 0))),
        # h_p -> hy, c_p -> cy: genuine in-place state update when the caller
        # keeps the state padded between steps.
        input_output_aliases={1: 0, 2: 1},
    )(x, h_p, c_p, packed["w_xh_p"], packed["w_hh_p"], packed["b_p"])
    return hy_p, cy_p


def generic_lstm_cell(x, packed, hx=None):
    """Drop-in GenericLSTMCell.forward: x [B, D_in], hx=(h, c) each [B, H] -> (hy, cy)."""
    B = x.shape[0]
    if hx is None:
        h_p, c_p = pad_state(packed, batch=B)
    else:
        h_p, c_p = pad_state(packed, hx[0], hx[1])
    hy_p, cy_p = generic_lstm_cell_padded(x, packed, h_p, c_p)
    hy, cy = unpad_state(packed, hy_p, cy_p)
    return hy.astype(x.dtype), cy.astype(x.dtype)


# ----------------------------------------------------------------------------
# Sequence-fused variant: time-blocked grid, fused x-projection, resident
# weights, f32 h/c carried in VMEM scratch, hy trajectory + final state only.
# ----------------------------------------------------------------------------
def _lstm_seq_kernel(x_ref, wxh_ref, whh_ref, b_ref, h0_ref, c0_ref,
                     hy_ref, hfin_ref, cfin_ref, h_scr, c_scr):
    ti = pl.program_id(1)                       # time-block index ("arbitrary" axis)
    Tc, Bt, Din = x_ref.shape
    Hp = h_scr.shape[-1]
    cdt = whh_ref.dtype

    # (Re-)initialize the carried state at the first time block of each batch tile.
    @pl.when(ti == 0)
    def _():
        h_scr[...] = h0_ref[...].astype(jnp.float32)
        c_scr[...] = c0_ref[...].astype(jnp.float32)

    # Fused non-recurrent x-projection: one (Tc*Bt)-row GEMM against the
    # VMEM-resident W_xh (+ folded bias) -> no xg HBM round trip.
    x2d = x_ref[...].reshape(Tc * Bt, Din).astype(cdt)
    xg = jnp.dot(x2d, wxh_ref[...], preferred_element_type=jnp.float32)
    xg = xg + b_ref[...].astype(jnp.float32)                  # [Tc*Bt, 4*Hp] f32

    w_hh = whh_ref[...]

    def step(t, carry):
        h, c = carry
        g = lax.dynamic_slice_in_dim(xg, t * Bt, Bt, axis=0)
        g = g + jnp.dot(h.astype(cdt), w_hh, preferred_element_type=jnp.float32)
        h_new, c_new = _gates_to_state(g, c, Hp)
        hy_ref[t] = h_new.astype(hy_ref.dtype)
        return h_new, c_new

    h_f, c_f = lax.fori_loop(0, Tc, step, (h_scr[...], c_scr[...]), unroll=True)
    h_scr[...] = h_f
    c_scr[...] = c_f
    # Final state outputs use a constant time-index block (resident across the
    # time axis); only the value written at the last time block is flushed.
    hfin_ref[...] = h_f
    cfin_ref[...] = c_f


def _choose_time_block(T, Bt, D_in, Hp, itemsize):
    """Largest divisor of T whose per-block VMEM (x block + hy block + f32 xg
    intermediate, double-buffered) stays well under the scoped-VMEM default,
    leaving room for the resident weights.  Re-derive the budget for v7x
    (64 MiB physical VMEM) or tile W_hh for very large H."""
    budget = 8 * 1024 * 1024

    def blk_bytes(tc):
        return tc * Bt * (2 * D_in * itemsize + 2 * Hp * 4 + 4 * Hp * 4)

    tc = T
    while tc > 1 and (T % tc != 0 or blk_bytes(tc) > budget):
        tc -= 1
    return tc


def generic_lstm_sequence(x_seq, packed, hx=None, *, time_block=None, batch_tile=None):
    """Apply the cell over x_seq [T, B, D_in].

    Returns (hy_seq [T, B, H], (h_fin_p, c_fin_p)) where the final state is the
    padded (B, Hp) f32 carry, ready to feed back into a subsequent call (pass it
    as `hx`) or unpad via unpad_state.  The per-step c trajectory is not written
    back (halves output DMA); use the single-step path if it is needed.
    """
    H, Hp = packed["hidden_size"], packed["hidden_pad"]
    cdt = packed["compute_dtype"]
    T, B, D_in = x_seq.shape
    out_dtype = x_seq.dtype

    if hx is None:
        h0_p, c0_p = pad_state(packed, batch=B)
    elif hx[0].shape[-1] == Hp:                 # already-padded carried state
        h0_p, c0_p = hx[0].astype(jnp.float32), hx[1].astype(jnp.float32)
    else:
        h0_p, c0_p = pad_state(packed, hx[0], hx[1])

    Bt = B if batch_tile is None else batch_tile
    assert B % Bt == 0 and (Bt == B or Bt % SUBLANE == 0)
    Tc = (_choose_time_block(T, Bt, D_in, Hp, np.dtype(cdt).itemsize)
          if time_block is None else time_block)
    assert T % Tc == 0

    x_in = x_seq.astype(cdt)   # bf16 input stream: halves serial per-step DMA

    hy_p, h_fin_p, c_fin_p = pl.pallas_call(
        _lstm_seq_kernel,
        out_shape=(jax.ShapeDtypeStruct((T, B, Hp), out_dtype),
                   jax.ShapeDtypeStruct((B, Hp), jnp.float32),
                   jax.ShapeDtypeStruct((B, Hp), jnp.float32)),
        grid_spec=pltpu.PrefetchScalarGridSpec(
            num_scalar_prefetch=0,
            grid=(B // Bt, T // Tc),
            in_specs=[
                pl.BlockSpec((Tc, Bt, D_in), lambda bi, ti: (ti, bi, 0)),      # x block
                pl.BlockSpec(packed["w_xh_p"].shape, lambda bi, ti: (0, 0)),   # W_xh resident
                pl.BlockSpec(packed["w_hh_p"].shape, lambda bi, ti: (0, 0)),   # W_hh resident
                pl.BlockSpec(packed["b_p"].shape, lambda bi, ti: (0, 0)),      # bias resident
                pl.BlockSpec((Bt, Hp), lambda bi, ti: (bi, 0)),                # h0 tile
                pl.BlockSpec((Bt, Hp), lambda bi, ti: (bi, 0)),                # c0 tile
            ],
            out_specs=(
                pl.BlockSpec((Tc, Bt, Hp), lambda bi, ti: (ti, bi, 0)),        # hy sequence
                pl.BlockSpec((Bt, Hp), lambda bi, ti: (bi, 0)),                # final h
                pl.BlockSpec((Bt, Hp), lambda bi, ti: (bi, 0)),                # final c
            ),
            scratch_shapes=[pltpu.VMEM((Bt, Hp), jnp.float32),                 # h carry (f32)
                            pltpu.VMEM((Bt, Hp), jnp.float32)],                # c carry (f32)
        ),
        compiler_params=pltpu.CompilerParams(
            # batch tiles are independent (v7x: shard across both TensorCores);
            # the time axis is the serial recurrence.
            dimension_semantics=("parallel", "arbitrary")),
    )(x_in, packed["w_xh_p"], packed["w_hh_p"], packed["b_p"], h0_p, c0_p)
    return hy_p[:, :, :H], (h_fin_p, c_fin_p)


# ----------------------------------------------------------------------------
# Pure-JAX references mirroring the PyTorch forward.
# ----------------------------------------------------------------------------
def reference_lstm_cell(x, params, hx=None):
    B = x.shape[0]
    H = params["w_hh"].shape[0]
    if hx is None:
        h_t = jnp.zeros((B, H), dtype=x.dtype)
        c_t = jnp.zeros((B, H), dtype=x.dtype)
    else:
        h_t, c_t = hx
    gates = (x @ params["w_xh"] + params["b_xh"]
             + h_t @ params["w_hh"] + params["b_hh"])
    ig, fg, cg, og = jnp.split(gates, 4, axis=1)
    i_t = jax.nn.sigmoid(ig)
    f_t = jax.nn.sigmoid(fg)
    g_t = jnp.tanh(cg)
    o_t = jax.nn.sigmoid(og)
    cy = c_t * f_t + i_t * g_t
    hy = o_t * jnp.tanh(cy)
    return hy, cy


def reference_lstm_sequence(x_seq, params, hx=None):
    B = x_seq.shape[1]
    H = params["w_hh"].shape[0]
    if hx is None:
        h = jnp.zeros((B, H), dtype=x_seq.dtype)
        c = jnp.zeros((B, H), dtype=x_seq.dtype)
    else:
        h, c = hx

    def step(carry, x):
        h, c = reference_lstm_cell(x, params, carry)
        return (h, c), h

    (h, c), hs = jax.lax.scan(step, (h, c), x_seq)
    return hs, (h, c)


if __name__ == "__main__":
    B, D_IN, HID, T = 8, 32, 32, 8

    key = jax.random.PRNGKey(0)
    k_x, k_xs, k_h, k_c, k_wxh, k_whh, k_bxh, k_bhh = jax.random.split(key, 8)

    scale_x = 1.0 / jnp.sqrt(D_IN)
    scale_h = 1.0 / jnp.sqrt(HID)
    params = {
        "w_xh": jax.random.uniform(k_wxh, (D_IN, 4 * HID), jnp.float32, -scale_x, scale_x),
        "w_hh": jax.random.uniform(k_whh, (HID, 4 * HID), jnp.float32, -scale_h, scale_h),
        "b_xh": jax.random.uniform(k_bxh, (4 * HID,), jnp.float32, -scale_x, scale_x),
        "b_hh": jax.random.uniform(k_bhh, (4 * HID,), jnp.float32, -scale_h, scale_h),
    }

    x = jax.random.normal(k_x, (B, D_IN), jnp.float32)
    x_seq = jax.random.normal(k_xs, (T, B, D_IN), jnp.float32)
    h0 = jax.random.normal(k_h, (B, HID), jnp.float32)
    c0 = jax.random.normal(k_c, (B, HID), jnp.float32)

    # References.
    hy_ref, cy_ref = reference_lstm_cell(x, params, hx=(h0, c0))
    hy0_ref, cy0_ref = reference_lstm_cell(x, params, hx=None)
    hs_ref, (hT_ref, cT_ref) = reference_lstm_sequence(x_seq, params, hx=(h0, c0))

    # ---- f32 compute path: strict parity with the PyTorch forward ----
    packed_f32 = pack_params(params, compute_dtype=jnp.float32)

    hy, cy = generic_lstm_cell(x, packed_f32, hx=(h0, c0))
    hy0, cy0 = generic_lstm_cell(x, packed_f32, hx=None)
    hs, (hT_p, cT_p) = generic_lstm_sequence(x_seq, packed_f32, hx=(h0, c0))
    hT, cT = unpad_state(packed_f32, hT_p, cT_p)
    jax.block_until_ready((hy, cy, hy0, cy0, hs, hT, cT))

    assert jnp.allclose(hy, hy_ref, atol=1e-4, rtol=1e-4)
    assert jnp.allclose(cy, cy_ref, atol=1e-4, rtol=1e-4)
    assert jnp.allclose(hy0, hy0_ref, atol=1e-4, rtol=1e-4)
    assert jnp.allclose(cy0, cy0_ref, atol=1e-4, rtol=1e-4)
    assert jnp.allclose(hs, hs_ref, atol=1e-4, rtol=1e-4)
    assert jnp.allclose(hT, hT_ref, atol=1e-4, rtol=1e-4)
    assert jnp.allclose(cT, cT_ref, atol=1e-4, rtol=1e-4)

    # ---- bf16 compute path: MXU-native weights/activations, f32 accumulation ----
    packed_bf16 = pack_params(params, compute_dtype=jnp.bfloat16)

    hy_b, cy_b = generic_lstm_cell(x, packed_bf16, hx=(h0, c0))
    hs_b, (hT_bp, cT_bp) = generic_lstm_sequence(x_seq, packed_bf16, hx=(h0, c0))
    hT_b, cT_b = unpad_state(packed_bf16, hT_bp, cT_bp)
    jax.block_until_ready((hy_b, cy_b, hs_b, hT_b, cT_b))

    assert jnp.allclose(hy_b, hy_ref, atol=5e-2, rtol=5e-2)
    assert jnp.allclose(cy_b, cy_ref, atol=5e-2, rtol=5e-2)
    assert jnp.allclose(hs_b, hs_ref, atol=5e-2, rtol=5e-2)
    assert jnp.allclose(hT_b, hT_ref, atol=5e-2, rtol=5e-2)
    assert jnp.allclose(cT_b, cT_ref, atol=5e-2, rtol=5e-2)

    print("KERNEL_OK")
</pallas_src>

<mosaic_0001>
module attributes {stable_mosaic.version = 11 : i64} {
  func.func @_lstm_cell_kernel(%arg0: memref<8x32xf32, #tpu.memory_space<vmem>>, %arg1: memref<8x128xf32, #tpu.memory_space<vmem>>, %arg2: memref<8x128xf32, #tpu.memory_space<vmem>>, %arg3: memref<32x512xf32, #tpu.memory_space<vmem>>, %arg4: memref<128x512xf32, #tpu.memory_space<vmem>>, %arg5: memref<1x512xf32, #tpu.memory_space<vmem>>, %arg6: memref<8x128xf32, #tpu.memory_space<vmem>>, %arg7: memref<8x128xf32, #tpu.memory_space<vmem>>) attributes {dimension_semantics = [], scalar_prefetch = 0 : i64, scratch_operands = 0 : i64, tpu.core_type = #tpu.core_type<tc>} {
    %c0 = arith.constant 0 : index
    %c0_0 = arith.constant 0 : index
    %0 = vector.load %arg5[%c0, %c0_0] : memref<1x512xf32, #tpu.memory_space<vmem>>, vector<1x512xf32>
    %c0_1 = arith.constant 0 : index
    %c0_2 = arith.constant 0 : index
    %1 = vector.load %arg0[%c0_1, %c0_2] : memref<8x32xf32, #tpu.memory_space<vmem>>, vector<8x32xf32>
    %c0_3 = arith.constant 0 : index
    %c0_4 = arith.constant 0 : index
    %2 = vector.load %arg3[%c0_3, %c0_4] : memref<32x512xf32, #tpu.memory_space<vmem>>, vector<32x512xf32>
    %cst = arith.constant dense<0.000000e+00> : vector<8x512xf32>
    %3 = tpu.matmul %1, %2, %cst {dimension_numbers = #tpu.dot_dimension_numbers<[1], [0], [0], [1], [0, 0, 1, 1], [], []>} : vector<8x32xf32>, vector<32x512xf32>, vector<8x512xf32> -> vector<8x512xf32>
    %4 = vector.broadcast %0 : vector<1x512xf32> to vector<8x512xf32>
    %5 = arith.addf %4, %3 : vector<8x512xf32>
    %c0_5 = arith.constant 0 : index
    %c0_6 = arith.constant 0 : index
    %6 = vector.load %arg1[%c0_5, %c0_6] : memref<8x128xf32, #tpu.memory_space<vmem>>, vector<8x128xf32>
    %c0_7 = arith.constant 0 : index
    %c0_8 = arith.constant 0 : index
    %7 = vector.load %arg4[%c0_7, %c0_8] : memref<128x512xf32, #tpu.memory_space<vmem>>, vector<128x512xf32>
    %cst_9 = arith.constant dense<0.000000e+00> : vector<8x512xf32>
    %8 = tpu.matmul %6, %7, %cst_9 {dimension_numbers = #tpu.dot_dimension_numbers<[1], [0], [0], [1], [0, 0, 1, 1], [], []>} : vector<8x128xf32>, vector<128x512xf32>, vector<8x512xf32> -> vector<8x512xf32>
    %9 = arith.addf %5, %8 : vector<8x512xf32>
    %c0_10 = arith.constant 0 : index
    %c0_11 = arith.constant 0 : index
    %10 = vector.load %arg2[%c0_10, %c0_11] : memref<8x128xf32, #tpu.memory_space<vmem>>, vector<8x128xf32>
    %11 = vector.extract_strided_slice %9 {offsets = [0, 0], sizes = [8, 128], strides = [1, 1]} : vector<8x512xf32> to vector<8x128xf32>
    %12 = math.tanh %11 : vector<8x128xf32>
    %cst_12 = arith.constant 5.000000e-01 : f32
    %13 = vector.broadcast %cst_12 : f32 to vector<8x128xf32>
    %14 = arith.mulf %13, %12 : vector<8x128xf32>
    %cst_13 = arith.constant 5.000000e-01 : f32
    %15 = vector.broadcast %cst_13 : f32 to vector<8x128xf32>
    %16 = arith.addf %14, %15 : vector<8x128xf32>
    %17 = vector.extract_strided_slice %9 {offsets = [0, 128], sizes = [8, 128], strides = [1, 1]} : vector<8x512xf32> to vector<8x128xf32>
    %18 = math.tanh %17 : vector<8x128xf32>
    %cst_14 = arith.constant 5.000000e-01 : f32
    %19 = vector.broadcast %cst_14 : f32 to vector<8x128xf32>
    %20 = arith.mulf %19, %18 : vector<8x128xf32>
    %cst_15 = arith.constant 5.000000e-01 : f32
    %21 = vector.broadcast %cst_15 : f32 to vector<8x128xf32>
    %22 = arith.addf %20, %21 : vector<8x128xf32>
    %23 = vector.extract_strided_slice %9 {offsets = [0, 256], sizes = [8, 128], strides = [1, 1]} : vector<8x512xf32> to vector<8x128xf32>
    %24 = math.tanh %23 : vector<8x128xf32>
    %25 = vector.extract_strided_slice %9 {offsets = [0, 384], sizes = [8, 128], strides = [1, 1]} : vector<8x512xf32> to vector<8x128xf32>
    %26 = math.tanh %25 : vector<8x128xf32>
    %cst_16 = arith.constant 5.000000e-01 : f32
    %27 = vector.broadcast %cst_16 : f32 to vector<8x128xf32>
    %28 = arith.mulf %27, %26 : vector<8x128xf32>
    %cst_17 = arith.constant 5.000000e-01 : f32
    %29 = vector.broadcast %cst_17 : f32 to vector<8x128xf32>
    %30 = arith.addf %28, %29 : vector<8x128xf32>
    %31 = arith.mulf %10, %22 : vector<8x128xf32>
    %32 = arith.mulf %16, %24 : vector<8x128xf32>
    %33 = arith.addf %31, %32 : vector<8x128xf32>
    %34 = math.tanh %33 : vector<8x128xf32>
    %35 = arith.mulf %30, %34 : vector<8x128xf32>
    %c0_18 = arith.constant 0 : index
    %c0_19 = arith.constant 0 : index
    %36 = vector.load %arg6[%c0_18, %c0_19] : memref<8x128xf32, #tpu.memory_space<vmem>>, vector<8x128xf32>
    tpu.vector_store %arg6[%c0_18, %c0_19], %35 {strides = array<i32>} : memref<8x128xf32, #tpu.memory_space<vmem>>, vector<8x128xf32>,
    %c0_20 = arith.constant 0 : index
    %c0_21 = arith.constant 0 : index
    %37 = vector.load %arg7[%c0_20, %c0_21] : memref<8x128xf32, #tpu.memory_space<vmem>>, vector<8x128xf32>
    tpu.vector_store %arg7[%c0_20, %c0_21], %33 {strides = array<i32>} : memref<8x128xf32, #tpu.memory_space<vmem>>, vector<8x128xf32>,
    return
  }
}

</mosaic_0001>

<llo_original>
// kernel: tpu_custom_call.1
$region0: #{tpu_custom_call.1}
  #allocation0 [shape = 'u32[]', space=smem, size = 0x4, offset = 0x4, fixed_abs, tag = 'smem constant byte address 0x4 - core index']
  #allocation1 [shape = 'u32[72,128]{1,0:T(1,128)}', space=vmem, size = 0x9000, scoped, tag = 'internal scratch']
  %s0 = inlined_call_operand.vmem [shape: f32[8,32], index: 0, kind: input, shape index: {}]
  %s1 = inlined_call_operand.hbm [shape: f32[8,128], index: 1, kind: input, shape index: {}, may-alias: {1,6}]
  %s2 = inlined_call_operand.hbm [shape: f32[8,128], index: 2, kind: input, shape index: {}, may-alias: {2,7}]
  %s3 = inlined_call_operand.hbm [shape: f32[32,512], index: 3, kind: input, shape index: {}]
  %s4 = inlined_call_operand.hbm [shape: f32[128,512], index: 4, kind: input, shape index: {}]
  %s5 = inlined_call_operand.vmem [shape: f32[1,512], index: 5, kind: input, shape index: {}]
  %s6 = inlined_call_operand.hbm [shape: f32[8,128], index: 6, kind: output, shape index: {0}, may-alias: {1,6}]
  %s7 = inlined_call_operand.hbm [shape: f32[8,128], index: 7, kind: output, shape index: {1}, may-alias: {2,7}]
  %8 = xla_tuple %s6, %s7
  %s9 = sld [smem:[#allocation0]]
  $region58: #{tpu_custom_call.1} parent=0
    _
  %s11 = ssub.s32 1, %s9
  %s12 = scalar_select 0, %s11, %s9
  $region1: #{tpu_custom_call.1} parent=0
    #allocation2 [shape = 'u8[4096]{0}', space=vmem, size = 0x1000, scoped, tag = 'input window, operand 1, single buffered']
    #allocation3 [shape = 's32[1]{0}', space=sflag, size = 0x4, scoped, tag = 'scoped memory for tpu_custom_call.1']
    #allocation4 [shape = 's32[1]{0}', space=sflag, size = 0x4, scoped, tag = 'scoped memory for tpu_custom_call.1']
    #allocation5 [shape = 'u8[4096]{0}', space=vmem, size = 0x1000, scoped, tag = 'input window, operand 2, single buffered']
    #allocation6 [shape = 's32[1]{0}', space=sflag, size = 0x4, scoped, tag = 'scoped memory for tpu_custom_call.1']
    #allocation7 [shape = 'u8[65536]{0}', space=vmem, size = 0x10000, scoped, tag = 'input window, operand 3, single buffered']
    #allocation8 [shape = 'u8[262144]{0}', space=vmem, size = 0x40000, scoped, tag = 'input window, operand 4, single buffered']
    #allocation9 [shape = 's32[1]{0}', space=sflag, size = 0x4, scoped, tag = 'scoped memory for tpu_custom_call.1']
    #allocation10 [shape = 'u8[4096]{0}', space=vmem, size = 0x1000, scoped, tag = 'output window, operand 0, single buffered']
    #allocation11 [shape = 'u8[4096]{0}', space=vmem, size = 0x1000, scoped, tag = 'output window, operand 1, single buffered']
    #allocation12 [shape = 's32[1]{0}', space=sflag, size = 0x4, scoped, tag = 'scoped memory for tpu_custom_call.1']
    %13 = vsyncpa [#allocation3], 0
    %14 = vsyncpa [#allocation6], 0
    %15 = vsyncpa [#allocation9], 0
    %16 = vsyncpa [#allocation4], 0
    %17 = vsyncpa [#allocation12], 0
    // Predicated region
    $region2: #{tpu_custom_call.1} parent=1 // pred_check
      _
    $region3: #{tpu_custom_call.1} parent=1 // pred_check_branch
      %19 = sbr.rel (0) target = $region5
    $region4: #{tpu_custom_call.1} parent=1 // pred_region
      _
    $region5: #{tpu_custom_call.1} parent=1 // pred_fallthru
      _
    // Predicated region
    $region6: #{tpu_custom_call.1} parent=1 // pred_check
      _
    $region7: #{tpu_custom_call.1} parent=1 // pred_check_branch
      %21 = sbr.rel (0) target = $region9
    $region8: #{tpu_custom_call.1} parent=1 // pred_region
      %23 = vsyncadd [#allocation3], 0
      %s25 = sshll.u32 %s1, 4
      %s26 = int_to_ptr.hbm [resolvable:$true] %s25
      %s27 = sshll.u32 [#allocation2], 4
      %s28 = int_to_ptr.vmem [resolvable:$true] %s27
      %30 = dma.hbm_to_vmem [thread:$0]  %s26, 128, %s28, [#allocation3]
    $region9: #{tpu_custom_call.1} parent=1 // pred_fallthru
      _
    // Predicated region
    $region10: #{tpu_custom_call.1} parent=1 // pred_check
      _
    $region11: #{tpu_custom_call.1} parent=1 // pred_check_branch
      %32 = sbr.rel (0) target = $region13
    $region12: #{tpu_custom_call.1} parent=1 // pred_region
      %34 = vsyncadd [#allocation6], 0
      %s36 = sshll.u32 %s2, 4
      %s37 = int_to_ptr.hbm [resolvable:$true] %s36
      %s38 = sshll.u32 [#allocation5], 4
      %s39 = int_to_ptr.vmem [resolvable:$true] %s38
      %41 = dma.hbm_to_vmem [thread:$0]  %s37, 128, %s39, [#allocation6]
    $region13: #{tpu_custom_call.1} parent=1 // pred_fallthru
      _
    // Predicated region
    $region14: #{tpu_custom_call.1} parent=1 // pred_check
      _
    $region15: #{tpu_custom_call.1} parent=1 // pred_check_branch
      %43 = sbr.rel (0) target = $region17
    $region16: #{tpu_custom_call.1} parent=1 // pred_region
      %45 = vsyncadd [#allocation6], 0
      %s46 = sshll.u32 %s3, 4
      %s47 = int_to_ptr.hbm [resolvable:$true] %s46
      %s48 = sshll.u32 [#allocation7], 4
      %s49 = int_to_ptr.vmem [resolvable:$true] %s48
      %54 = dma.hbm_to_vmem [thread:$0]  %s47, 2048, %s49, [#allocation6], 512, 512, 32
    $region17: #{tpu_custom_call.1} parent=1 // pred_fallthru
      _
    // Predicated region
    $region18: #{tpu_custom_call.1} parent=1 // pred_check
      _
    $region19: #{tpu_custom_call.1} parent=1 // pred_check_branch
      %56 = sbr.rel (0) target = $region21
    $region20: #{tpu_custom_call.1} parent=1 // pred_region
      %58 = vsyncadd [#allocation9], 0
      %s59 = sshll.u32 %s4, 4
      %s60 = int_to_ptr.hbm [resolvable:$true] %s59
      %s61 = sshll.u32 [#allocation8], 4
      %s62 = int_to_ptr.vmem [resolvable:$true] %s61
      %67 = dma.hbm_to_vmem [thread:$0]  %s60, 8192, %s62, [#allocation9], 512, 512, 32
    $region21: #{tpu_custom_call.1} parent=1 // pred_fallthru
      _
    // Predicated region
    $region22: #{tpu_custom_call.1} parent=1 // pred_check
      _
    $region23: #{tpu_custom_call.1} parent=1 // pred_check_branch
      %69 = sbr.rel (0) target = $region25
    $region24: #{tpu_custom_call.1} parent=1 // pred_region
      _
    $region25: #{tpu_custom_call.1} parent=1 // pred_fallthru
      _
    // Predicated region
    $region26: #{tpu_custom_call.1} parent=1 // pred_check
      _
    $region27: #{tpu_custom_call.1} parent=1 // pred_check_branch
      %71 = sbr.rel (0) target = $region29
    $region28: #{tpu_custom_call.1} parent=1 // pred_region
      %73 = dma.done [#allocation3], 128
    $region29: #{tpu_custom_call.1} parent=1 // pred_fallthru
      _
    // Predicated region
    $region30: #{tpu_custom_call.1} parent=1 // pred_check
      _
    $region31: #{tpu_custom_call.1} parent=1 // pred_check_branch
      %75 = sbr.rel (0) target = $region33
    $region32: #{tpu_custom_call.1} parent=1 // pred_region
      %77 = dma.done [#allocation6], 128
    $region33: #{tpu_custom_call.1} parent=1 // pred_fallthru
      _
    // Predicated region
    $region34: #{tpu_custom_call.1} parent=1 // pred_check
      _
    $region35: #{tpu_custom_call.1} parent=1 // pred_check_branch
      %79 = sbr.rel (0) target = $region37
    $region36: #{tpu_custom_call.1} parent=1 // pred_region
      %81 = dma.done [#allocation6], 2048
    $region37: #{tpu_custom_call.1} parent=1 // pred_fallthru
      _
    // Predicated region
    $region38: #{tpu_custom_call.1} parent=1 // pred_check
      _
    $region39: #{tpu_custom_call.1} parent=1 // pred_check_branch
      %83 = sbr.rel (0) target = $region41
    $region40: #{tpu_custom_call.1} parent=1 // pred_region
      %85 = dma.done [#allocation9], 8192
    $region41: #{tpu_custom_call.1} parent=1 // pred_fallthru
      _
    %v86 = vld [vmem:[%s5] sm:$0xf]
    %v87 = vld [vmem:[%s0] sm:$0xff]
    %v88 = vld [vmem:[#allocation7] sm:$0xff]
    %v89 = vld [vmem:[#allocation7 + $0x8] sm:$0xff]
    %v90 = vld [vmem:[#allocation7 + $0x10] sm:$0xff]
    %v91 = vld [vmem:[#allocation7 + $0x18] sm:$0xff]
    %v92 = vld [vmem:[#allocation7 + $0x20] sm:$0xff]
    %v93 = vld [vmem:[#allocation7 + $0x28] sm:$0xff]
    %v94 = vld [vmem:[#allocation7 + $0x30] sm:$0xff]
    %v95 = vld [vmem:[#allocation7 + $0x38] sm:$0xff]
    %v96 = vld [vmem:[#allocation7 + $0x40] sm:$0xff]
    %v97 = vld [vmem:[#allocation7 + $0x48] sm:$0xff]
    %v98 = vld [vmem:[#allocation7 + $0x50] sm:$0xff]
    %v99 = vld [vmem:[#allocation7 + $0x58] sm:$0xff]
    %v100 = vld [vmem:[#allocation7 + $0x60] sm:$0xff]
    %v101 = vld [vmem:[#allocation7 + $0x68] sm:$0xff]
    %v102 = vld [vmem:[#allocation7 + $0x70] sm:$0xff]
    %v103 = vld [vmem:[#allocation7 + $0x78] sm:$0xff]
    %vm104 = vcmask 261120
    %v106 = vsel %vm104, %v87, 0
    %108 = vmatpush.msra.mxu0 0.0
    %109 = vmatpush.msra.mxu0 0.0
    %110 = vmatpush.msra.mxu0 0.0
    %111 = vmatpush.msra.mxu0 0.0
    %112 = vmatpush.msra.mxu0 0.0
    %113 = vmatpush.msra.mxu0 0.0
    %114 = vmatpush.msra.mxu0 0.0
    %115 = vmatpush.msra.mxu0 0.0
    %116 = vmatpush.msra.mxu0 0.0
    %117 = vmatpush.msra.mxu0 0.0
    %118 = vmatpush.msra.mxu0 0.0
    %119 = vmatpush.msra.mxu0 0.0
    %120 = vmatpush.msra.mxu0 %v100
    %121 = vmatpush.msra.mxu0 %v96
    %122 = vmatpush.msra.mxu0 %v92
    %123 = vmatpush.msra.mxu0 %v88
    %124 = vmatmul.f32.gmra.mxu0 %v106
    %v125 = vpop.f32.mrf.mxu0
    %v126 = vadd.f32 0.0, %v125
    %127 = vdwg.mxu0
    %128 = vmatpush.msra.mxu0 0.0
    %129 = vmatpush.msra.mxu0 0.0
    %130 = vmatpush.msra.mxu0 0.0
    %131 = vmatpush.msra.mxu0 0.0
    %132 = vmatpush.msra.mxu0 0.0
    %133 = vmatpush.msra.mxu0 0.0
    %134 = vmatpush.msra.mxu0 0.0
    %135 = vmatpush.msra.mxu0 0.0
    %136 = vmatpush.msra.mxu0 0.0
    %137 = vmatpush.msra.mxu0 0.0
    %138 = vmatpush.msra.mxu0 0.0
    %139 = vmatpush.msra.mxu0 0.0
    %140 = vmatpush.msra.mxu0 %v101
    %141 = vmatpush.msra.mxu0 %v97
    %142 = vmatpush.msra.mxu0 %v93
    %143 = vmatpush.msra.mxu0 %v89
    %144 = vmatmul.f32.gmra.mxu0 %v106
    %v145 = vpop.f32.mrf.mxu0
    %v146 = vadd.f32 0.0, %v145
    %147 = vdwg.mxu0
    %148 = vmatpush.msra.mxu0 0.0
    %149 = vmatpush.msra.mxu0 0.0
    %150 = vmatpush.msra.mxu0 0.0
    %151 = vmatpush.msra.mxu0 0.0
    %152 = vmatpush.msra.mxu0 0.0
    %153 = vmatpush.msra.mxu0 0.0
    %154 = vmatpush.msra.mxu0 0.0
    %155 = vmatpush.msra.mxu0 0.0
    %156 = vmatpush.msra.mxu0 0.0
    %157 = vmatpush.msra.mxu0 0.0
    %158 = vmatpush.msra.mxu0 0.0
    %159 = vmatpush.msra.mxu0 0.0
    %160 = vmatpush.msra.mxu0 %v102
    %161 = vmatpush.msra.mxu0 %v98
    %162 = vmatpush.msra.mxu0 %v94
    %163 = vmatpush.msra.mxu0 %v90
    %164 = vmatmul.f32.gmra.mxu0 %v106
    %v165 = vpop.f32.mrf.mxu0
    %v166 = vadd.f32 0.0, %v165
    %167 = vdwg.mxu0
    %168 = vmatpush.msra.mxu0 0.0
    %169 = vmatpush.msra.mxu0 0.0
    %170 = vmatpush.msra.mxu0 0.0
    %171 = vmatpush.msra.mxu0 0.0
    %172 = vmatpush.msra.mxu0 0.0
    %173 = vmatpush.msra.mxu0 0.0
    %174 = vmatpush.msra.mxu0 0.0
    %175 = vmatpush.msra.mxu0 0.0
    %176 = vmatpush.msra.mxu0 0.0
    %177 = vmatpush.msra.mxu0 0.0
    %178 = vmatpush.msra.mxu0 0.0
    %179 = vmatpush.msra.mxu0 0.0
    %180 = vmatpush.msra.mxu0 %v103
    %181 = vmatpush.msra.mxu0 %v99
    %182 = vmatpush.msra.mxu0 %v95
    %183 = vmatpush.msra.mxu0 %v91
    %184 = vmatmul.f32.gmra.mxu0 %v106
    %v185 = vpop.f32.mrf.mxu0
    %v186 = vadd.f32 0.0, %v185
    %187 = vdwg.mxu0
    %v189 = vperm.slane %v86, 0
    %v190 = vperm.slane %v86, 1
    %v191 = vperm.slane %v86, 2
    %v192 = vperm.slane %v86, 3
    %v197 = vadd.f32 %v189, %v126
    %v198 = vadd.f32 %v190, %v146
    %v199 = vadd.f32 %v191, %v166
    %v200 = vadd.f32 %v192, %v186
    %v201 = vld [vmem:[#allocation2] sm:$0xff]
    %v202 = vld [vmem:[#allocation8] sm:$0xff]
    %v203 = vld [vmem:[#allocation8 + $0x8] sm:$0xff]
    %v204 = vld [vmem:[#allocation8 + $0x10] sm:$0xff]
    %v205 = vld [vmem:[#allocation8 + $0x18] sm:$0xff]
    %v206 = vld [vmem:[#allocation8 + $0x20] sm:$0xff]
    %v207 = vld [vmem:[#allocation8 + $0x28] sm:$0xff]
    %v208 = vld [vmem:[#allocation8 + $0x30] sm:$0xff]
    %v209 = vld [vmem:[#allocation8 + $0x38] sm:$0xff]
    %v210 = vld [vmem:[#allocation8 + $0x40] sm:$0xff]
    %v211 = vld [vmem:[#allocation8 + $0x48] sm:$0xff]
    %v212 = vld [vmem:[#allocation8 + $0x50] sm:$0xff]
    %v213 = vld [vmem:[#allocation8 + $0x58] sm:$0xff]
    %v214 = vld [vmem:[#allocation8 + $0x60] sm:$0xff]
    %v215 = vld [vmem:[#allocation8 + $0x68] sm:$0xff]
    %v216 = vld [vmem:[#allocation8 + $0x70] sm:$0xff]
    %v217 = vld [vmem:[#allocation8 + $0x78] sm:$0xff]
    %v218 = vld [vmem:[#allocation8 + $0x80] sm:$0xff]
    %v219 = vld [vmem:[#allocation8 + $0x88] sm:$0xff]
    %v220 = vld [vmem:[#allocation8 + $0x90] sm:$0xff]
    %v221 = vld [vmem:[#allocation8 + $0x98] sm:$0xff]
    %v222 = vld [vmem:[#allocation8 + $0xa0] sm:$0xff]
    %v223 = vld [vmem:[#allocation8 + $0xa8] sm:$0xff]
    %v224 = vld [vmem:[#allocation8 + $0xb0] sm:$0xff]
    %v225 = vld [vmem:[#allocation8 + $0xb8] sm:$0xff]
    %v226 = vld [vmem:[#allocation8 + $0xc0] sm:$0xff]
    %v227 = vld [vmem:[#allocation8 + $0xc8] sm:$0xff]
    %v228 = vld [vmem:[#allocation8 + $0xd0] sm:$0xff]
    %v229 = vld [vmem:[#allocation8 + $0xd8] sm:$0xff]
    %v230 = vld [vmem:[#allocation8 + $0xe0] sm:$0xff]
    %v231 = vld [vmem:[#allocation8 + $0xe8] sm:$0xff]
    %v232 = vld [vmem:[#allocation8 + $0xf0] sm:$0xff]
    %v233 = vld [vmem:[#allocation8 + $0xf8] sm:$0xff]
    %v234 = vld [vmem:[#allocation8 + $0x100] sm:$0xff]
    %v235 = vld [vmem:[#allocation8 + $0x108] sm:$0xff]
    %v236 = vld [vmem:[#allocation8 + $0x110] sm:$0xff]
    %v237 = vld [vmem:[#allocation8 + $0x118] sm:$0xff]
    %v238 = vld [vmem:[#allocation8 + $0x120] sm:$0xff]
    %v239 = vld [vmem:[#allocation8 + $0x128] sm:$0xff]
    %v240 = vld [vmem:[#allocation8 + $0x130] sm:$0xff]
    %v241 = vld [vmem:[#allocation8 + $0x138] sm:$0xff]
    %v242 = vld [vmem:[#allocation8 + $0x140] sm:$0xff]
    %v243 = vld [vmem:[#allocation8 + $0x148] sm:$0xff]
    %v244 = vld [vmem:[#allocation8 + $0x150] sm:$0xff]
    %v245 = vld [vmem:[#allocation8 + $0x158] sm:$0xff]
    %v246 = vld [vmem:[#allocation8 + $0x160] sm:$0xff]
    %v247 = vld [vmem:[#allocation8 + $0x168] sm:$0xff]
    %v248 = vld [vmem:[#allocation8 + $0x170] sm:$0xff]
    %v249 = vld [vmem:[#allocation8 + $0x178] sm:$0xff]
    %v250 = vld [vmem:[#allocation8 + $0x180] sm:$0xff]
    %v251 = vld [vmem:[#allocation8 + $0x188] sm:$0xff]
    %v252 = vld [vmem:[#allocation8 + $0x190] sm:$0xff]
    %v253 = vld [vmem:[#allocation8 + $0x198] sm:$0xff]
    %v254 = vld [vmem:[#allocation8 + $0x1a0] sm:$0xff]
    %v255 = vld [vmem:[#allocation8 + $0x1a8] sm:$0xff]
    %v256 = vld [vmem:[#allocation8 + $0x1b0] sm:$0xff]
    %v257 = vld [vmem:[#allocation8 + $0x1b8] sm:$0xff]
    %v258 = vld [vmem:[#allocation8 + $0x1c0] sm:$0xff]
    %v259 = vld [vmem:[#allocation8 + $0x1c8] sm:$0xff]
    %v260 = vld [vmem:[#allocation8 + $0x1d0] sm:$0xff]
    %v261 = vld [vmem:[#allocation8 + $0x1d8] sm:$0xff]
    %v262 = vld [vmem:[#allocation8 + $0x1e0] sm:$0xff]
    %v263 = vld [vmem:[#allocation8 + $0x1e8] sm:$0xff]
    %v264 = vld [vmem:[#allocation8 + $0x1f0] sm:$0xff]
    %v265 = vld [vmem:[#allocation8 + $0x1f8] sm:$0xff]
    %266 = vmatpush.msra.mxu0 %v262
    %267 = vmatpush.msra.mxu0 %v258
    %268 = vmatpush.msra.mxu0 %v254
    %269 = vmatpush.msra.mxu0 %v250
    %270 = vmatpush.msra.mxu0 %v246
    %271 = vmatpush.msra.mxu0 %v242
    %272 = vmatpush.msra.mxu0 %v238
    %273 = vmatpush.msra.mxu0 %v234
    %274 = vmatpush.msra.mxu0 %v230
    %275 = vmatpush.msra.mxu0 %v226
    %276 = vmatpush.msra.mxu0 %v222
    %277 = vmatpush.msra.mxu0 %v218
    %278 = vmatpush.msra.mxu0 %v214
    %279 = vmatpush.msra.mxu0 %v210
    %280 = vmatpush.msra.mxu0 %v206
    %281 = vmatpush.msra.mxu0 %v202
    %282 = vmatmul.f32.gmra.mxu0 %v201
    %v283 = vpop.f32.mrf.mxu0
    %v284 = vadd.f32 0.0, %v283
    %285 = vdwg.mxu0
    %286 = vmatpush.msra.mxu0 %v263
    %287 = vmatpush.msra.mxu0 %v259
    %288 = vmatpush.msra.mxu0 %v255
    %289 = vmatpush.msra.mxu0 %v251
    %290 = vmatpush.msra.mxu0 %v247
    %291 = vmatpush.msra.mxu0 %v243
    %292 = vmatpush.msra.mxu0 %v239
    %293 = vmatpush.msra.mxu0 %v235
    %294 = vmatpush.msra.mxu0 %v231
    %295 = vmatpush.msra.mxu0 %v227
    %296 = vmatpush.msra.mxu0 %v223
    %297 = vmatpush.msra.mxu0 %v219
    %298 = vmatpush.msra.mxu0 %v215
    %299 = vmatpush.msra.mxu0 %v211
    %300 = vmatpush.msra.mxu0 %v207
    %301 = vmatpush.msra.mxu0 %v203
    %302 = vmatmul.f32.gmra.mxu0 %v201
    %v303 = vpop.f32.mrf.mxu0
    %v304 = vadd.f32 0.0, %v303
    %305 = vdwg.mxu0
    %306 = vmatpush.msra.mxu0 %v264
    %307 = vmatpush.msra.mxu0 %v260
    %308 = vmatpush.msra.mxu0 %v256
    %309 = vmatpush.msra.mxu0 %v252
    %310 = vmatpush.msra.mxu0 %v248
    %311 = vmatpush.msra.mxu0 %v244
    %312 = vmatpush.msra.mxu0 %v240
    %313 = vmatpush.msra.mxu0 %v236
    %314 = vmatpush.msra.mxu0 %v232
    %315 = vmatpush.msra.mxu0 %v228
    %316 = vmatpush.msra.mxu0 %v224
    %317 = vmatpush.msra.mxu0 %v220
    %318 = vmatpush.msra.mxu0 %v216
    %319 = vmatpush.msra.mxu0 %v212
    %320 = vmatpush.msra.mxu0 %v208
    %321 = vmatpush.msra.mxu0 %v204
    %322 = vmatmul.f32.gmra.mxu0 %v201
    %v323 = vpop.f32.mrf.mxu0
    %v324 = vadd.f32 0.0, %v323
    %325 = vdwg.mxu0
    %326 = vmatpush.msra.mxu0 %v265
    %327 = vmatpush.msra.mxu0 %v261
    %328 = vmatpush.msra.mxu0 %v257
    %329 = vmatpush.msra.mxu0 %v253
    %330 = vmatpush.msra.mxu0 %v249
    %331 = vmatpush.msra.mxu0 %v245
    %332 = vmatpush.msra.mxu0 %v241
    %333 = vmatpush.msra.mxu0 %v237
    %334 = vmatpush.msra.mxu0 %v233
    %335 = vmatpush.msra.mxu0 %v229
    %336 = vmatpush.msra.mxu0 %v225
    %337 = vmatpush.msra.mxu0 %v221
    %338 = vmatpush.msra.mxu0 %v217
    %339 = vmatpush.msra.mxu0 %v213
    %340 = vmatpush.msra.mxu0 %v209
    %341 = vmatpush.msra.mxu0 %v205
    %342 = vmatmul.f32.gmra.mxu0 %v201
    %v343 = vpop.f32.mrf.mxu0
    %v344 = vadd.f32 0.0, %v343
    %345 = vdwg.mxu0
    %v346 = vadd.f32 %v197, %v284
    %v347 = vadd.f32 %v198, %v304
    %v348 = vadd.f32 %v199, %v324
    %v349 = vadd.f32 %v200, %v344
    %v350 = vld [vmem:[#allocation5] sm:$0xff]
    %v351 = vtanh.pop %v346
    %v352 = vmul.f32 %v351, 0.5
    %v353 = vadd.f32 %v352, 0.5
    %v354 = vtanh.pop %v347
    %v355 = vmul.f32 %v354, 0.5
    %v356 = vadd.f32 %v355, 0.5
    %v357 = vtanh.pop %v348
    %v358 = vtanh.pop %v349
    %v359 = vmul.f32 %v358, 0.5
    %v360 = vadd.f32 %v359, 0.5
    %v361 = vmul.f32 %v350, %v356
    %v362 = vmul.f32 %v353, %v357
    %v363 = vadd.f32 %v361, %v362
    %v364 = vtanh.pop %v363
    %v365 = vmul.f32 %v360, %v364
    %366 = vst [vmem:[#allocation10] sm:$0xff] %v365
    %367 = vst [vmem:[#allocation11] sm:$0xff] %v363
    // Predicated region
    $region42: #{tpu_custom_call.1} parent=1 // pred_check
      _
    $region43: #{tpu_custom_call.1} parent=1 // pred_check_branch
      %369 = sbr.rel (0) target = $region45
    $region44: #{tpu_custom_call.1} parent=1 // pred_region
      %371 = vsyncadd [#allocation4], 0
      %s373 = sshll.u32 [#allocation10], 4
      %s374 = int_to_ptr.vmem [resolvable:$true] %s373
      %s375 = sshll.u32 %s6, 4
      %s376 = int_to_ptr.hbm [resolvable:$true] %s375
      %378 = dma.vmem_to_hbm [thread:$0]  %s374, 128, %s376, [#allocation4]
    $region45: #{tpu_custom_call.1} parent=1 // pred_fallthru
      _
    // Predicated region
    $region46: #{tpu_custom_call.1} parent=1 // pred_check
      _
    $region47: #{tpu_custom_call.1} parent=1 // pred_check_branch
      %380 = sbr.rel (0) target = $region49
    $region48: #{tpu_custom_call.1} parent=1 // pred_region
      %382 = vsyncadd [#allocation12], 0
      %s384 = sshll.u32 [#allocation11], 4
      %s385 = int_to_ptr.vmem [resolvable:$true] %s384
      %s386 = sshll.u32 %s7, 4
      %s387 = int_to_ptr.hbm [resolvable:$true] %s386
      %389 = dma.vmem_to_hbm [thread:$0]  %s385, 128, %s387, [#allocation12]
    $region49: #{tpu_custom_call.1} parent=1 // pred_fallthru
      _
    // Predicated region
    $region50: #{tpu_custom_call.1} parent=1 // pred_check
      _
    $region51: #{tpu_custom_call.1} parent=1 // pred_check_branch
      %391 = sbr.rel (0) target = $region53
    $region52: #{tpu_custom_call.1} parent=1 // pred_region
      %393 = dma.done [#allocation4], 128
    $region53: #{tpu_custom_call.1} parent=1 // pred_fallthru
      _
    // Predicated region
    $region54: #{tpu_custom_call.1} parent=1 // pred_check
      _
    $region55: #{tpu_custom_call.1} parent=1 // pred_check_branch
      %395 = sbr.rel (0) target = $region57
    $region56: #{tpu_custom_call.1} parent=1 // pred_region
      %397 = dma.done [#allocation12], 128
    $region57: #{tpu_custom_call.1} parent=1 // pred_fallthru
      _
    %398 = vsyncpa [#allocation3], 1
    %399 = vsyncpa [#allocation6], 1
    %400 = vsyncpa [#allocation9], 1
    %401 = vsyncpa [#allocation4], 1
    %402 = vsyncpa [#allocation12], 1

</llo_original>
